<compile_context>
chip_gen: v7x
topology: tpu7x:2x2x1
jax: 0.10.0
libtpu: 0.0.40
codegen_flags: <defaults>
</compile_context>

<pallas_src>
import jax
import jax.numpy as jnp
from jax.experimental import pallas as pl
from jax.experimental.pallas import tpu as pltpu


def gru_recurrence_kernel(gi_ref, whh_ref, bhh_ref, hs_ref, h_ref):
    """Sequential GRU recurrence over one block of TB timesteps.

    gi_ref : (TB, B, 3H)  precomputed x_t @ W_ih^T + b_ih, gate order [r, z, n]
    whh_ref: (H, 3H)      W_hh^T
    bhh_ref: (1, 3H)      b_hh
    hs_ref : (TB, B, H)   output hidden states for this block
    h_ref  : (B, H)       VMEM scratch; hidden state carried across grid steps
    """
    TB = gi_ref.shape[0]
    H = h_ref.shape[1]

    @pl.when(pl.program_id(0) == 0)
    def _():
        h_ref[...] = jnp.zeros_like(h_ref)

    # Load the (constant) recurrent weights once per grid step, outside the loop.
    whh = whh_ref[...]
    bhh = bhh_ref[...]

    def step(s, h_prev):
        gi = gi_ref[s]                                              # (B, 3H)
        gh = jnp.dot(h_prev, whh, preferred_element_type=jnp.float32) + bhh

        i_r, i_z, i_n = gi[:, :H], gi[:, H:2 * H], gi[:, 2 * H:]
        h_r, h_z, h_n = gh[:, :H], gh[:, H:2 * H], gh[:, 2 * H:]

        r = jax.nn.sigmoid(i_r + h_r)
        z = jax.nn.sigmoid(i_z + h_z)
        n = jnp.tanh(i_n + r * h_n)
        h_new = (1.0 - z) * n + z * h_prev

        hs_ref[s] = h_new.astype(hs_ref.dtype)
        return h_new

    # Fully unrolled inner loop over the timestep block; h carried as a value
    # (register/vreg resident), written back to scratch once per grid step.
    h_last = jax.lax.fori_loop(0, TB, step, h_ref[...], unroll=True)
    h_ref[...] = h_last


def one_rnn_forward(x, params, block_t=8):
    """x: (B, T, IN) float32. Returns (B, T, C) float32 (matching out.squeeze(),
    a no-op for B > 1 and T > 1)."""
    B, T, IN = x.shape
    wih, whh, bih, bhh, wl, bl = params
    H = whh.shape[0]
    C = wl.shape[1]

    # ---- Stage 1: hoisted input projection (one (T*B, IN) @ (IN, 3H) matmul).
    x_tm = jnp.transpose(x, (1, 0, 2))                              # (T, B, IN)
    gi = (x_tm.reshape(T * B, IN) @ wih + bih).reshape(T, B, 3 * H)

    # Pad T to a multiple of the timestep block (padded steps produce hidden
    # states that are sliced off; they come after the last valid step so they
    # never affect valid outputs).
    TB = min(block_t, T)
    T_pad = ((T + TB - 1) // TB) * TB
    if T_pad != T:
        gi = jnp.pad(gi, ((0, T_pad - T), (0, 0), (0, 0)))

    # ---- Stage 2: Pallas recurrence kernel.
    hs = pl.pallas_call(
        gru_recurrence_kernel,
        out_shape=jax.ShapeDtypeStruct((T_pad, B, H), jnp.float32),
        grid_spec=pltpu.PrefetchScalarGridSpec(
            num_scalar_prefetch=0,
            grid=(T_pad // TB,),
            in_specs=[
                pl.BlockSpec((TB, B, 3 * H), lambda i: (i, 0, 0)),  # gi block
                pl.BlockSpec((H, 3 * H), lambda i: (0, 0)),         # W_hh^T (const)
                pl.BlockSpec((1, 3 * H), lambda i: (0, 0)),         # b_hh   (const)
            ],
            out_specs=pl.BlockSpec((TB, B, H), lambda i: (i, 0, 0)),
            scratch_shapes=[pltpu.VMEM((B, H), jnp.float32)],       # hidden state
        ),
        compiler_params=pltpu.CompilerParams(
            dimension_semantics=("arbitrary",),  # sequential recurrence over T blocks
        ),
    )(gi, whh, bhh)

    hs = hs[:T]                                                     # strip padding

    # ---- Stage 3: batched output Linear (one (T*B, H) @ (H, C) matmul).
    logits = (hs.reshape(T * B, H) @ wl + bl).reshape(T, B, C)
    return jnp.transpose(logits, (1, 0, 2))                         # (B, T, C)


def one_rnn_reference(x, params):
    """Pure-JAX per-step reference of the PyTorch GRU + Linear forward."""
    wih, whh, bih, bhh, wl, bl = params
    B, T, IN = x.shape
    H = whh.shape[0]

    def step(h, x_t):
        gi = x_t @ wih + bih[0]
        gh = h @ whh + bhh[0]
        i_r, i_z, i_n = gi[:, :H], gi[:, H:2 * H], gi[:, 2 * H:]
        h_r, h_z, h_n = gh[:, :H], gh[:, H:2 * H], gh[:, 2 * H:]
        r = jax.nn.sigmoid(i_r + h_r)
        z = jax.nn.sigmoid(i_z + h_z)
        n = jnp.tanh(i_n + r * h_n)
        h_new = (1.0 - z) * n + z * h
        return h_new, h_new

    h0 = jnp.zeros((B, H), jnp.float32)
    _, hs = jax.lax.scan(step, h0, jnp.transpose(x, (1, 0, 2)))
    out = jnp.transpose(hs, (1, 0, 2))  # (B, T, H)
    return out @ wl + bl[0]


def init_params(key, in_size, hid_size, class_num):
    """Deterministic synthetic parameters with PyTorch GRU shapes, stored
    pre-transposed for the kernel:
      W_ih^T: (IN, 3H), W_hh^T: (H, 3H), b_ih/b_hh: (1, 3H),
      W_linear^T: (H, C), b_linear: (1, C). Gate order [r, z, n]."""
    ks = jax.random.split(key, 6)
    scale = 0.1
    wih = scale * jax.random.normal(ks[0], (in_size, 3 * hid_size), jnp.float32)
    whh = scale * jax.random.normal(ks[1], (hid_size, 3 * hid_size), jnp.float32)
    bih = scale * jax.random.normal(ks[2], (1, 3 * hid_size), jnp.float32)
    bhh = scale * jax.random.normal(ks[3], (1, 3 * hid_size), jnp.float32)
    wl = scale * jax.random.normal(ks[4], (hid_size, class_num), jnp.float32)
    bl = scale * jax.random.normal(ks[5], (1, class_num), jnp.float32)
    return (wih, whh, bih, bhh, wl, bl)


if __name__ == "__main__":
    B, T, IN, H, C = 2, 8, 16, 32, 2

    key = jax.random.PRNGKey(0)
    k_x, k_p = jax.random.split(key)
    x = jax.random.normal(k_x, (B, T, IN), jnp.float32)
    params = init_params(k_p, IN, H, C)

    out = jax.block_until_ready(one_rnn_forward(x, params))
    ref = jax.block_until_ready(one_rnn_reference(x, params))
    assert out.shape == (B, T, C), out.shape
    assert jnp.allclose(out, ref, atol=1e-5, rtol=1e-5), float(jnp.max(jnp.abs(out - ref)))

    # Also exercise the multi-block path (grid > 1, h carried across grid steps,
    # T not divisible by the timestep block -> padding path).
    T2 = 20
    x2 = jax.random.normal(jax.random.PRNGKey(1), (B, T2, IN), jnp.float32)
    out2 = jax.block_until_ready(one_rnn_forward(x2, params, block_t=8))
    ref2 = jax.block_until_ready(one_rnn_reference(x2, params))
    assert out2.shape == (B, T2, C), out2.shape
    assert jnp.allclose(out2, ref2, atol=1e-5, rtol=1e-5), float(jnp.max(jnp.abs(out2 - ref2)))

    print("KERNEL_OK")
</pallas_src>

<mosaic_0001>
module attributes {stable_mosaic.version = 11 : i64} {
  func.func @gru_recurrence_kernel(%arg0: i32, %arg1: memref<8x2x96xf32, #tpu.memory_space<vmem>>, %arg2: memref<32x96xf32, #tpu.memory_space<vmem>>, %arg3: memref<1x96xf32, #tpu.memory_space<vmem>>, %arg4: memref<8x2x32xf32, #tpu.memory_space<vmem>>, %arg5: memref<2x32xf32, #tpu.memory_space<vmem>>) attributes {dimension_semantics = [#tpu.dimension_semantics<arbitrary>], iteration_bounds = array<i64: 1>, scalar_prefetch = 0 : i64, scratch_operands = 1 : i64, tpu.core_type = #tpu.core_type<tc>, window_params = [{transform_indices = @transform_0, window_bounds = array<i64: 8, 2, 96>}, {pipeline_mode = #tpu.pipeline_mode<synchronous>, transform_indices = @transform_1, window_bounds = array<i64: 32, 96>}, {pipeline_mode = #tpu.pipeline_mode<synchronous>, transform_indices = @transform_2, window_bounds = array<i64: 1, 96>}, {transform_indices = @transform_3, window_bounds = array<i64: 8, 2, 32>}]} {
    %c0_i32 = arith.constant 0 : i32
    %0 = arith.cmpi eq, %arg0, %c0_i32 : i32
    %1 = arith.extui %0 : i1 to i32
    %c0_i32_0 = arith.constant 0 : i32
    %2 = arith.cmpi ne, %1, %c0_i32_0 : i32
    scf.if %2 {
      %cst_72 = arith.constant 0.000000e+00 : f32
      %295 = vector.broadcast %cst_72 : f32 to vector<2x32xf32>
      %c0_73 = arith.constant 0 : index
      %c0_74 = arith.constant 0 : index
      %296 = vector.load %arg5[%c0_73, %c0_74] : memref<2x32xf32, #tpu.memory_space<vmem>>, vector<2x32xf32>
      tpu.vector_store %arg5[%c0_73, %c0_74], %295 {strides = array<i32>} : memref<2x32xf32, #tpu.memory_space<vmem>>, vector<2x32xf32>,
    } else {
    }
    %c0 = arith.constant 0 : index
    %c0_1 = arith.constant 0 : index
    %3 = vector.load %arg2[%c0, %c0_1] : memref<32x96xf32, #tpu.memory_space<vmem>>, vector<32x96xf32>
    %c0_2 = arith.constant 0 : index
    %c0_3 = arith.constant 0 : index
    %4 = vector.load %arg3[%c0_2, %c0_3] : memref<1x96xf32, #tpu.memory_space<vmem>>, vector<1x96xf32>
    %c0_4 = arith.constant 0 : index
    %c0_5 = arith.constant 0 : index
    %5 = vector.load %arg5[%c0_4, %c0_5] : memref<2x32xf32, #tpu.memory_space<vmem>>, vector<2x32xf32>
    %c0_i32_6 = arith.constant 0 : i32
    %6 = arith.index_cast %c0_i32_6 : i32 to index
    %c0_7 = arith.constant 0 : index
    %c0_8 = arith.constant 0 : index
    %7 = vector.load %arg1[%6, %c0_7, %c0_8] : memref<8x2x96xf32, #tpu.memory_space<vmem>>, vector<1x2x96xf32>
    %8 = vector.shape_cast %7 : vector<1x2x96xf32> to vector<2x96xf32>
    %cst = arith.constant dense<0.000000e+00> : vector<2x96xf32>
    %9 = tpu.matmul %5, %3, %cst {dimension_numbers = #tpu.dot_dimension_numbers<[1], [0], [0], [1], [0, 0, 1, 1], [], []>} : vector<2x32xf32>, vector<32x96xf32>, vector<2x96xf32> -> vector<2x96xf32>
    %10 = vector.broadcast %4 : vector<1x96xf32> to vector<2x96xf32>
    %11 = arith.addf %9, %10 : vector<2x96xf32>
    %12 = vector.extract_strided_slice %8 {offsets = [0, 0], sizes = [2, 32], strides = [1, 1]} : vector<2x96xf32> to vector<2x32xf32>
    %13 = vector.extract_strided_slice %8 {offsets = [0, 32], sizes = [2, 32], strides = [1, 1]} : vector<2x96xf32> to vector<2x32xf32>
    %14 = vector.extract_strided_slice %8 {offsets = [0, 64], sizes = [2, 32], strides = [1, 1]} : vector<2x96xf32> to vector<2x32xf32>
    %15 = vector.extract_strided_slice %11 {offsets = [0, 0], sizes = [2, 32], strides = [1, 1]} : vector<2x96xf32> to vector<2x32xf32>
    %16 = vector.extract_strided_slice %11 {offsets = [0, 32], sizes = [2, 32], strides = [1, 1]} : vector<2x96xf32> to vector<2x32xf32>
    %17 = vector.extract_strided_slice %11 {offsets = [0, 64], sizes = [2, 32], strides = [1, 1]} : vector<2x96xf32> to vector<2x32xf32>
    %18 = arith.addf %12, %15 : vector<2x32xf32>
    %19 = arith.negf %18 : vector<2x32xf32>
    %20 = math.exp %19 : vector<2x32xf32>
    %cst_9 = arith.constant 1.000000e+00 : f32
    %21 = vector.broadcast %cst_9 : f32 to vector<2x32xf32>
    %22 = arith.addf %21, %20 : vector<2x32xf32>
    %23 = arith.divf %21, %22 : vector<2x32xf32>
    %24 = arith.addf %13, %16 : vector<2x32xf32>
    %25 = arith.negf %24 : vector<2x32xf32>
    %26 = math.exp %25 : vector<2x32xf32>
    %cst_10 = arith.constant 1.000000e+00 : f32
    %27 = vector.broadcast %cst_10 : f32 to vector<2x32xf32>
    %28 = arith.addf %27, %26 : vector<2x32xf32>
    %29 = arith.divf %27, %28 : vector<2x32xf32>
    %30 = arith.mulf %23, %17 : vector<2x32xf32>
    %31 = arith.addf %14, %30 : vector<2x32xf32>
    %32 = math.tanh %31 : vector<2x32xf32>
    %cst_11 = arith.constant 1.000000e+00 : f32
    %33 = vector.broadcast %cst_11 : f32 to vector<2x32xf32>
    %34 = arith.subf %33, %29 : vector<2x32xf32>
    %35 = arith.mulf %34, %32 : vector<2x32xf32>
    %36 = arith.mulf %29, %5 : vector<2x32xf32>
    %37 = arith.addf %35, %36 : vector<2x32xf32>
    %38 = arith.index_cast %c0_i32_6 : i32 to index
    %c0_12 = arith.constant 0 : index
    %c0_13 = arith.constant 0 : index
    %39 = vector.load %arg4[%38, %c0_12, %c0_13] : memref<8x2x32xf32, #tpu.memory_space<vmem>>, vector<1x2x32xf32>
    %40 = vector.shape_cast %39 : vector<1x2x32xf32> to vector<2x32xf32>
    %41 = vector.shape_cast %37 : vector<2x32xf32> to vector<1x2x32xf32>
    tpu.vector_store %arg4[%38, %c0_12, %c0_13], %41 {strides = array<i32>} : memref<8x2x32xf32, #tpu.memory_space<vmem>>, vector<1x2x32xf32>,
    %c1_i32 = arith.constant 1 : i32
    %42 = arith.index_cast %c1_i32 : i32 to index
    %c0_14 = arith.constant 0 : index
    %c0_15 = arith.constant 0 : index
    %43 = vector.load %arg1[%42, %c0_14, %c0_15] : memref<8x2x96xf32, #tpu.memory_space<vmem>>, vector<1x2x96xf32>
    %44 = vector.shape_cast %43 : vector<1x2x96xf32> to vector<2x96xf32>
    %cst_16 = arith.constant dense<0.000000e+00> : vector<2x96xf32>
    %45 = tpu.matmul %37, %3, %cst_16 {dimension_numbers = #tpu.dot_dimension_numbers<[1], [0], [0], [1], [0, 0, 1, 1], [], []>} : vector<2x32xf32>, vector<32x96xf32>, vector<2x96xf32> -> vector<2x96xf32>
    %46 = vector.broadcast %4 : vector<1x96xf32> to vector<2x96xf32>
    %47 = arith.addf %45, %46 : vector<2x96xf32>
    %48 = vector.extract_strided_slice %44 {offsets = [0, 0], sizes = [2, 32], strides = [1, 1]} : vector<2x96xf32> to vector<2x32xf32>
    %49 = vector.extract_strided_slice %44 {offsets = [0, 32], sizes = [2, 32], strides = [1, 1]} : vector<2x96xf32> to vector<2x32xf32>
    %50 = vector.extract_strided_slice %44 {offsets = [0, 64], sizes = [2, 32], strides = [1, 1]} : vector<2x96xf32> to vector<2x32xf32>
    %51 = vector.extract_strided_slice %47 {offsets = [0, 0], sizes = [2, 32], strides = [1, 1]} : vector<2x96xf32> to vector<2x32xf32>
    %52 = vector.extract_strided_slice %47 {offsets = [0, 32], sizes = [2, 32], strides = [1, 1]} : vector<2x96xf32> to vector<2x32xf32>
    %53 = vector.extract_strided_slice %47 {offsets = [0, 64], sizes = [2, 32], strides = [1, 1]} : vector<2x96xf32> to vector<2x32xf32>
    %54 = arith.addf %48, %51 : vector<2x32xf32>
    %55 = arith.negf %54 : vector<2x32xf32>
    %56 = math.exp %55 : vector<2x32xf32>
    %cst_17 = arith.constant 1.000000e+00 : f32
    %57 = vector.broadcast %cst_17 : f32 to vector<2x32xf32>
    %58 = arith.addf %57, %56 : vector<2x32xf32>
    %59 = arith.divf %57, %58 : vector<2x32xf32>
    %60 = arith.addf %49, %52 : vector<2x32xf32>
    %61 = arith.negf %60 : vector<2x32xf32>
    %62 = math.exp %61 : vector<2x32xf32>
    %cst_18 = arith.constant 1.000000e+00 : f32
    %63 = vector.broadcast %cst_18 : f32 to vector<2x32xf32>
    %64 = arith.addf %63, %62 : vector<2x32xf32>
    %65 = arith.divf %63, %64 : vector<2x32xf32>
    %66 = arith.mulf %59, %53 : vector<2x32xf32>
    %67 = arith.addf %50, %66 : vector<2x32xf32>
    %68 = math.tanh %67 : vector<2x32xf32>
    %cst_19 = arith.constant 1.000000e+00 : f32
    %69 = vector.broadcast %cst_19 : f32 to vector<2x32xf32>
    %70 = arith.subf %69, %65 : vector<2x32xf32>
    %71 = arith.mulf %70, %68 : vector<2x32xf32>
    %72 = arith.mulf %65, %37 : vector<2x32xf32>
    %73 = arith.addf %71, %72 : vector<2x32xf32>
    %74 = arith.index_cast %c1_i32 : i32 to index
    %c0_20 = arith.constant 0 : index
    %c0_21 = arith.constant 0 : index
    %75 = vector.load %arg4[%74, %c0_20, %c0_21] : memref<8x2x32xf32, #tpu.memory_space<vmem>>, vector<1x2x32xf32>
    %76 = vector.shape_cast %75 : vector<1x2x32xf32> to vector<2x32xf32>
    %77 = vector.shape_cast %73 : vector<2x32xf32> to vector<1x2x32xf32>
    tpu.vector_store %arg4[%74, %c0_20, %c0_21], %77 {strides = array<i32>} : memref<8x2x32xf32, #tpu.memory_space<vmem>>, vector<1x2x32xf32>,
    %c2_i32 = arith.constant 2 : i32
    %78 = arith.index_cast %c2_i32 : i32 to index
    %c0_22 = arith.constant 0 : index
    %c0_23 = arith.constant 0 : index
    %79 = vector.load %arg1[%78, %c0_22, %c0_23] : memref<8x2x96xf32, #tpu.memory_space<vmem>>, vector<1x2x96xf32>
    %80 = vector.shape_cast %79 : vector<1x2x96xf32> to vector<2x96xf32>
    %cst_24 = arith.constant dense<0.000000e+00> : vector<2x96xf32>
    %81 = tpu.matmul %73, %3, %cst_24 {dimension_numbers = #tpu.dot_dimension_numbers<[1], [0], [0], [1], [0, 0, 1, 1], [], []>} : vector<2x32xf32>, vector<32x96xf32>, vector<2x96xf32> -> vector<2x96xf32>
    %82 = vector.broadcast %4 : vector<1x96xf32> to vector<2x96xf32>
    %83 = arith.addf %81, %82 : vector<2x96xf32>
    %84 = vector.extract_strided_slice %80 {offsets = [0, 0], sizes = [2, 32], strides = [1, 1]} : vector<2x96xf32> to vector<2x32xf32>
    %85 = vector.extract_strided_slice %80 {offsets = [0, 32], sizes = [2, 32], strides = [1, 1]} : vector<2x96xf32> to vector<2x32xf32>
    %86 = vector.extract_strided_slice %80 {offsets = [0, 64], sizes = [2, 32], strides = [1, 1]} : vector<2x96xf32> to vector<2x32xf32>
    %87 = vector.extract_strided_slice %83 {offsets = [0, 0], sizes = [2, 32], strides = [1, 1]} : vector<2x96xf32> to vector<2x32xf32>
    %88 = vector.extract_strided_slice %83 {offsets = [0, 32], sizes = [2, 32], strides = [1, 1]} : vector<2x96xf32> to vector<2x32xf32>
    %89 = vector.extract_strided_slice %83 {offsets = [0, 64], sizes = [2, 32], strides = [1, 1]} : vector<2x96xf32> to vector<2x32xf32>
    %90 = arith.addf %84, %87 : vector<2x32xf32>
    %91 = arith.negf %90 : vector<2x32xf32>
    %92 = math.exp %91 : vector<2x32xf32>
    %cst_25 = arith.constant 1.000000e+00 : f32
    %93 = vector.broadcast %cst_25 : f32 to vector<2x32xf32>
    %94 = arith.addf %93, %92 : vector<2x32xf32>
    %95 = arith.divf %93, %94 : vector<2x32xf32>
    %96 = arith.addf %85, %88 : vector<2x32xf32>
    %97 = arith.negf %96 : vector<2x32xf32>
    %98 = math.exp %97 : vector<2x32xf32>
    %cst_26 = arith.constant 1.000000e+00 : f32
    %99 = vector.broadcast %cst_26 : f32 to vector<2x32xf32>
    %100 = arith.addf %99, %98 : vector<2x32xf32>
    %101 = arith.divf %99, %100 : vector<2x32xf32>
    %102 = arith.mulf %95, %89 : vector<2x32xf32>
    %103 = arith.addf %86, %102 : vector<2x32xf32>
    %104 = math.tanh %103 : vector<2x32xf32>
    %cst_27 = arith.constant 1.000000e+00 : f32
    %105 = vector.broadcast %cst_27 : f32 to vector<2x32xf32>
    %106 = arith.subf %105, %101 : vector<2x32xf32>
    %107 = arith.mulf %106, %104 : vector<2x32xf32>
    %108 = arith.mulf %101, %73 : vector<2x32xf32>
    %109 = arith.addf %107, %108 : vector<2x32xf32>
    %110 = arith.index_cast %c2_i32 : i32 to index
    %c0_28 = arith.constant 0 : index
    %c0_29 = arith.constant 0 : index
    %111 = vector.load %arg4[%110, %c0_28, %c0_29] : memref<8x2x32xf32, #tpu.memory_space<vmem>>, vector<1x2x32xf32>
    %112 = vector.shape_cast %111 : vector<1x2x32xf32> to vector<2x32xf32>
    %113 = vector.shape_cast %109 : vector<2x32xf32> to vector<1x2x32xf32>
    tpu.vector_store %arg4[%110, %c0_28, %c0_29], %113 {strides = array<i32>} : memref<8x2x32xf32, #tpu.memory_space<vmem>>, vector<1x2x32xf32>,
    %c3_i32 = arith.constant 3 : i32
    %114 = arith.index_cast %c3_i32 : i32 to index
    %c0_30 = arith.constant 0 : index
    %c0_31 = arith.constant 0 : index
    %115 = vector.load %arg1[%114, %c0_30, %c0_31] : memref<8x2x96xf32, #tpu.memory_space<vmem>>, vector<1x2x96xf32>
    %116 = vector.shape_cast %115 : vector<1x2x96xf32> to vector<2x96xf32>
    %cst_32 = arith.constant dense<0.000000e+00> : vector<2x96xf32>
    %117 = tpu.matmul %109, %3, %cst_32 {dimension_numbers = #tpu.dot_dimension_numbers<[1], [0], [0], [1], [0, 0, 1, 1], [], []>} : vector<2x32xf32>, vector<32x96xf32>, vector<2x96xf32> -> vector<2x96xf32>
    %118 = vector.broadcast %4 : vector<1x96xf32> to vector<2x96xf32>
    %119 = arith.addf %117, %118 : vector<2x96xf32>
    %120 = vector.extract_strided_slice %116 {offsets = [0, 0], sizes = [2, 32], strides = [1, 1]} : vector<2x96xf32> to vector<2x32xf32>
    %121 = vector.extract_strided_slice %116 {offsets = [0, 32], sizes = [2, 32], strides = [1, 1]} : vector<2x96xf32> to vector<2x32xf32>
    %122 = vector.extract_strided_slice %116 {offsets = [0, 64], sizes = [2, 32], strides = [1, 1]} : vector<2x96xf32> to vector<2x32xf32>
    %123 = vector.extract_strided_slice %119 {offsets = [0, 0], sizes = [2, 32], strides = [1, 1]} : vector<2x96xf32> to vector<2x32xf32>
    %124 = vector.extract_strided_slice %119 {offsets = [0, 32], sizes = [2, 32], strides = [1, 1]} : vector<2x96xf32> to vector<2x32xf32>
    %125 = vector.extract_strided_slice %119 {offsets = [0, 64], sizes = [2, 32], strides = [1, 1]} : vector<2x96xf32> to vector<2x32xf32>
    %126 = arith.addf %120, %123 : vector<2x32xf32>
    %127 = arith.negf %126 : vector<2x32xf32>
    %128 = math.exp %127 : vector<2x32xf32>
    %cst_33 = arith.constant 1.000000e+00 : f32
    %129 = vector.broadcast %cst_33 : f32 to vector<2x32xf32>
    %130 = arith.addf %129, %128 : vector<2x32xf32>
    %131 = arith.divf %129, %130 : vector<2x32xf32>
    %132 = arith.addf %121, %124 : vector<2x32xf32>
    %133 = arith.negf %132 : vector<2x32xf32>
    %134 = math.exp %133 : vector<2x32xf32>
    %cst_34 = arith.constant 1.000000e+00 : f32
    %135 = vector.broadcast %cst_34 : f32 to vector<2x32xf32>
    %136 = arith.addf %135, %134 : vector<2x32xf32>
    %137 = arith.divf %135, %136 : vector<2x32xf32>
    %138 = arith.mulf %131, %125 : vector<2x32xf32>
    %139 = arith.addf %122, %138 : vector<2x32xf32>
    %140 = math.tanh %139 : vector<2x32xf32>
    %cst_35 = arith.constant 1.000000e+00 : f32
    %141 = vector.broadcast %cst_35 : f32 to vector<2x32xf32>
    %142 = arith.subf %141, %137 : vector<2x32xf32>
    %143 = arith.mulf %142, %140 : vector<2x32xf32>
    %144 = arith.mulf %137, %109 : vector<2x32xf32>
    %145 = arith.addf %143, %144 : vector<2x32xf32>
    %146 = arith.index_cast %c3_i32 : i32 to index
    %c0_36 = arith.constant 0 : index
    %c0_37 = arith.constant 0 : index
    %147 = vector.load %arg4[%146, %c0_36, %c0_37] : memref<8x2x32xf32, #tpu.memory_space<vmem>>, vector<1x2x32xf32>
    %148 = vector.shape_cast %147 : vector<1x2x32xf32> to vector<2x32xf32>
    %149 = vector.shape_cast %145 : vector<2x32xf32> to vector<1x2x32xf32>
    tpu.vector_store %arg4[%146, %c0_36, %c0_37], %149 {strides = array<i32>} : memref<8x2x32xf32, #tpu.memory_space<vmem>>, vector<1x2x32xf32>,
    %c4_i32 = arith.constant 4 : i32
    %150 = arith.index_cast %c4_i32 : i32 to index
    %c0_38 = arith.constant 0 : index
    %c0_39 = arith.constant 0 : index
    %151 = vector.load %arg1[%150, %c0_38, %c0_39] : memref<8x2x96xf32, #tpu.memory_space<vmem>>, vector<1x2x96xf32>
    %152 = vector.shape_cast %151 : vector<1x2x96xf32> to vector<2x96xf32>
    %cst_40 = arith.constant dense<0.000000e+00> : vector<2x96xf32>
    %153 = tpu.matmul %145, %3, %cst_40 {dimension_numbers = #tpu.dot_dimension_numbers<[1], [0], [0], [1], [0, 0, 1, 1], [], []>} : vector<2x32xf32>, vector<32x96xf32>, vector<2x96xf32> -> vector<2x96xf32>
    %154 = vector.broadcast %4 : vector<1x96xf32> to vector<2x96xf32>
    %155 = arith.addf %153, %154 : vector<2x96xf32>
    %156 = vector.extract_strided_slice %152 {offsets = [0, 0], sizes = [2, 32], strides = [1, 1]} : vector<2x96xf32> to vector<2x32xf32>
    %157 = vector.extract_strided_slice %152 {offsets = [0, 32], sizes = [2, 32], strides = [1, 1]} : vector<2x96xf32> to vector<2x32xf32>
    %158 = vector.extract_strided_slice %152 {offsets = [0, 64], sizes = [2, 32], strides = [1, 1]} : vector<2x96xf32> to vector<2x32xf32>
    %159 = vector.extract_strided_slice %155 {offsets = [0, 0], sizes = [2, 32], strides = [1, 1]} : vector<2x96xf32> to vector<2x32xf32>
    %160 = vector.extract_strided_slice %155 {offsets = [0, 32], sizes = [2, 32], strides = [1, 1]} : vector<2x96xf32> to vector<2x32xf32>
    %161 = vector.extract_strided_slice %155 {offsets = [0, 64], sizes = [2, 32], strides = [1, 1]} : vector<2x96xf32> to vector<2x32xf32>
    %162 = arith.addf %156, %159 : vector<2x32xf32>
    %163 = arith.negf %162 : vector<2x32xf32>
    %164 = math.exp %163 : vector<2x32xf32>
    %cst_41 = arith.constant 1.000000e+00 : f32
    %165 = vector.broadcast %cst_41 : f32 to vector<2x32xf32>
    %166 = arith.addf %165, %164 : vector<2x32xf32>
    %167 = arith.divf %165, %166 : vector<2x32xf32>
    %168 = arith.addf %157, %160 : vector<2x32xf32>
    %169 = arith.negf %168 : vector<2x32xf32>
    %170 = math.exp %169 : vector<2x32xf32>
    %cst_42 = arith.constant 1.000000e+00 : f32
    %171 = vector.broadcast %cst_42 : f32 to vector<2x32xf32>
    %172 = arith.addf %171, %170 : vector<2x32xf32>
    %173 = arith.divf %171, %172 : vector<2x32xf32>
    %174 = arith.mulf %167, %161 : vector<2x32xf32>
    %175 = arith.addf %158, %174 : vector<2x32xf32>
    %176 = math.tanh %175 : vector<2x32xf32>
    %cst_43 = arith.constant 1.000000e+00 : f32
    %177 = vector.broadcast %cst_43 : f32 to vector<2x32xf32>
    %178 = arith.subf %177, %173 : vector<2x32xf32>
    %179 = arith.mulf %178, %176 : vector<2x32xf32>
    %180 = arith.mulf %173, %145 : vector<2x32xf32>
    %181 = arith.addf %179, %180 : vector<2x32xf32>
    %182 = arith.index_cast %c4_i32 : i32 to index
    %c0_44 = arith.constant 0 : index
    %c0_45 = arith.constant 0 : index
    %183 = vector.load %arg4[%182, %c0_44, %c0_45] : memref<8x2x32xf32, #tpu.memory_space<vmem>>, vector<1x2x32xf32>
    %184 = vector.shape_cast %183 : vector<1x2x32xf32> to vector<2x32xf32>
    %185 = vector.shape_cast %181 : vector<2x32xf32> to vector<1x2x32xf32>
    tpu.vector_store %arg4[%182, %c0_44, %c0_45], %185 {strides = array<i32>} : memref<8x2x32xf32, #tpu.memory_space<vmem>>, vector<1x2x32xf32>,
    %c5_i32 = arith.constant 5 : i32
    %186 = arith.index_cast %c5_i32 : i32 to index
    %c0_46 = arith.constant 0 : index
    %c0_47 = arith.constant 0 : index
    %187 = vector.load %arg1[%186, %c0_46, %c0_47] : memref<8x2x96xf32, #tpu.memory_space<vmem>>, vector<1x2x96xf32>
    %188 = vector.shape_cast %187 : vector<1x2x96xf32> to vector<2x96xf32>
    %cst_48 = arith.constant dense<0.000000e+00> : vector<2x96xf32>
    %189 = tpu.matmul %181, %3, %cst_48 {dimension_numbers = #tpu.dot_dimension_numbers<[1], [0], [0], [1], [0, 0, 1, 1], [], []>} : vector<2x32xf32>, vector<32x96xf32>, vector<2x96xf32> -> vector<2x96xf32>
    %190 = vector.broadcast %4 : vector<1x96xf32> to vector<2x96xf32>
    %191 = arith.addf %189, %190 : vector<2x96xf32>
    %192 = vector.extract_strided_slice %188 {offsets = [0, 0], sizes = [2, 32], strides = [1, 1]} : vector<2x96xf32> to vector<2x32xf32>
    %193 = vector.extract_strided_slice %188 {offsets = [0, 32], sizes = [2, 32], strides = [1, 1]} : vector<2x96xf32> to vector<2x32xf32>
    %194 = vector.extract_strided_slice %188 {offsets = [0, 64], sizes = [2, 32], strides = [1, 1]} : vector<2x96xf32> to vector<2x32xf32>
    %195 = vector.extract_strided_slice %191 {offsets = [0, 0], sizes = [2, 32], strides = [1, 1]} : vector<2x96xf32> to vector<2x32xf32>
    %196 = vector.extract_strided_slice %191 {offsets = [0, 32], sizes = [2, 32], strides = [1, 1]} : vector<2x96xf32> to vector<2x32xf32>
    %197 = vector.extract_strided_slice %191 {offsets = [0, 64], sizes = [2, 32], strides = [1, 1]} : vector<2x96xf32> to vector<2x32xf32>
    %198 = arith.addf %192, %195 : vector<2x32xf32>
    %199 = arith.negf %198 : vector<2x32xf32>
    %200 = math.exp %199 : vector<2x32xf32>
    %cst_49 = arith.constant 1.000000e+00 : f32
    %201 = vector.broadcast %cst_49 : f32 to vector<2x32xf32>
    %202 = arith.addf %201, %200 : vector<2x32xf32>
    %203 = arith.divf %201, %202 : vector<2x32xf32>
    %204 = arith.addf %193, %196 : vector<2x32xf32>
    %205 = arith.negf %204 : vector<2x32xf32>
    %206 = math.exp %205 : vector<2x32xf32>
    %cst_50 = arith.constant 1.000000e+00 : f32
    %207 = vector.broadcast %cst_50 : f32 to vector<2x32xf32>
    %208 = arith.addf %207, %206 : vector<2x32xf32>
    %209 = arith.divf %207, %208 : vector<2x32xf32>
    %210 = arith.mulf %203, %197 : vector<2x32xf32>
    %211 = arith.addf %194, %210 : vector<2x32xf32>
    %212 = math.tanh %211 : vector<2x32xf32>
    %cst_51 = arith.constant 1.000000e+00 : f32
    %213 = vector.broadcast %cst_51 : f32 to vector<2x32xf32>
    %214 = arith.subf %213, %209 : vector<2x32xf32>
    %215 = arith.mulf %214, %212 : vector<2x32xf32>
    %216 = arith.mulf %209, %181 : vector<2x32xf32>
    %217 = arith.addf %215, %216 : vector<2x32xf32>
    %218 = arith.index_cast %c5_i32 : i32 to index
    %c0_52 = arith.constant 0 : index
    %c0_53 = arith.constant 0 : index
    %219 = vector.load %arg4[%218, %c0_52, %c0_53] : memref<8x2x32xf32, #tpu.memory_space<vmem>>, vector<1x2x32xf32>
    %220 = vector.shape_cast %219 : vector<1x2x32xf32> to vector<2x32xf32>
    %221 = vector.shape_cast %217 : vector<2x32xf32> to vector<1x2x32xf32>
    tpu.vector_store %arg4[%218, %c0_52, %c0_53], %221 {strides = array<i32>} : memref<8x2x32xf32, #tpu.memory_space<vmem>>, vector<1x2x32xf32>,
    %c6_i32 = arith.constant 6 : i32
    %222 = arith.index_cast %c6_i32 : i32 to index
    %c0_54 = arith.constant 0 : index
    %c0_55 = arith.constant 0 : index
    %223 = vector.load %arg1[%222, %c0_54, %c0_55] : memref<8x2x96xf32, #tpu.memory_space<vmem>>, vector<1x2x96xf32>
    %224 = vector.shape_cast %223 : vector<1x2x96xf32> to vector<2x96xf32>
    %cst_56 = arith.constant dense<0.000000e+00> : vector<2x96xf32>
    %225 = tpu.matmul %217, %3, %cst_56 {dimension_numbers = #tpu.dot_dimension_numbers<[1], [0], [0], [1], [0, 0, 1, 1], [], []>} : vector<2x32xf32>, vector<32x96xf32>, vector<2x96xf32> -> vector<2x96xf32>
    %226 = vector.broadcast %4 : vector<1x96xf32> to vector<2x96xf32>
    %227 = arith.addf %225, %226 : vector<2x96xf32>
    %228 = vector.extract_strided_slice %224 {offsets = [0, 0], sizes = [2, 32], strides = [1, 1]} : vector<2x96xf32> to vector<2x32xf32>
    %229 = vector.extract_strided_slice %224 {offsets = [0, 32], sizes = [2, 32], strides = [1, 1]} : vector<2x96xf32> to vector<2x32xf32>
    %230 = vector.extract_strided_slice %224 {offsets = [0, 64], sizes = [2, 32], strides = [1, 1]} : vector<2x96xf32> to vector<2x32xf32>
    %231 = vector.extract_strided_slice %227 {offsets = [0, 0], sizes = [2, 32], strides = [1, 1]} : vector<2x96xf32> to vector<2x32xf32>
    %232 = vector.extract_strided_slice %227 {offsets = [0, 32], sizes = [2, 32], strides = [1, 1]} : vector<2x96xf32> to vector<2x32xf32>
    %233 = vector.extract_strided_slice %227 {offsets = [0, 64], sizes = [2, 32], strides = [1, 1]} : vector<2x96xf32> to vector<2x32xf32>
    %234 = arith.addf %228, %231 : vector<2x32xf32>
    %235 = arith.negf %234 : vector<2x32xf32>
    %236 = math.exp %235 : vector<2x32xf32>
    %cst_57 = arith.constant 1.000000e+00 : f32
    %237 = vector.broadcast %cst_57 : f32 to vector<2x32xf32>
    %238 = arith.addf %237, %236 : vector<2x32xf32>
    %239 = arith.divf %237, %238 : vector<2x32xf32>
    %240 = arith.addf %229, %232 : vector<2x32xf32>
    %241 = arith.negf %240 : vector<2x32xf32>
    %242 = math.exp %241 : vector<2x32xf32>
    %cst_58 = arith.constant 1.000000e+00 : f32
    %243 = vector.broadcast %cst_58 : f32 to vector<2x32xf32>
    %244 = arith.addf %243, %242 : vector<2x32xf32>
    %245 = arith.divf %243, %244 : vector<2x32xf32>
    %246 = arith.mulf %239, %233 : vector<2x32xf32>
    %247 = arith.addf %230, %246 : vector<2x32xf32>
    %248 = math.tanh %247 : vector<2x32xf32>
    %cst_59 = arith.constant 1.000000e+00 : f32
    %249 = vector.broadcast %cst_59 : f32 to vector<2x32xf32>
    %250 = arith.subf %249, %245 : vector<2x32xf32>
    %251 = arith.mulf %250, %248 : vector<2x32xf32>
    %252 = arith.mulf %245, %217 : vector<2x32xf32>
    %253 = arith.addf %251, %252 : vector<2x32xf32>
    %254 = arith.index_cast %c6_i32 : i32 to index
    %c0_60 = arith.constant 0 : index
    %c0_61 = arith.constant 0 : index
    %255 = vector.load %arg4[%254, %c0_60, %c0_61] : memref<8x2x32xf32, #tpu.memory_space<vmem>>, vector<1x2x32xf32>
    %256 = vector.shape_cast %255 : vector<1x2x32xf32> to vector<2x32xf32>
    %257 = vector.shape_cast %253 : vector<2x32xf32> to vector<1x2x32xf32>
    tpu.vector_store %arg4[%254, %c0_60, %c0_61], %257 {strides = array<i32>} : memref<8x2x32xf32, #tpu.memory_space<vmem>>, vector<1x2x32xf32>,
    %c7_i32 = arith.constant 7 : i32
    %258 = arith.index_cast %c7_i32 : i32 to index
    %c0_62 = arith.constant 0 : index
    %c0_63 = arith.constant 0 : index
    %259 = vector.load %arg1[%258, %c0_62, %c0_63] : memref<8x2x96xf32, #tpu.memory_space<vmem>>, vector<1x2x96xf32>
    %260 = vector.shape_cast %259 : vector<1x2x96xf32> to vector<2x96xf32>
    %cst_64 = arith.constant dense<0.000000e+00> : vector<2x96xf32>
    %261 = tpu.matmul %253, %3, %cst_64 {dimension_numbers = #tpu.dot_dimension_numbers<[1], [0], [0], [1], [0, 0, 1, 1], [], []>} : vector<2x32xf32>, vector<32x96xf32>, vector<2x96xf32> -> vector<2x96xf32>
    %262 = vector.broadcast %4 : vector<1x96xf32> to vector<2x96xf32>
    %263 = arith.addf %261, %262 : vector<2x96xf32>
    %264 = vector.extract_strided_slice %260 {offsets = [0, 0], sizes = [2, 32], strides = [1, 1]} : vector<2x96xf32> to vector<2x32xf32>
    %265 = vector.extract_strided_slice %260 {offsets = [0, 32], sizes = [2, 32], strides = [1, 1]} : vector<2x96xf32> to vector<2x32xf32>
    %266 = vector.extract_strided_slice %260 {offsets = [0, 64], sizes = [2, 32], strides = [1, 1]} : vector<2x96xf32> to vector<2x32xf32>
    %267 = vector.extract_strided_slice %263 {offsets = [0, 0], sizes = [2, 32], strides = [1, 1]} : vector<2x96xf32> to vector<2x32xf32>
    %268 = vector.extract_strided_slice %263 {offsets = [0, 32], sizes = [2, 32], strides = [1, 1]} : vector<2x96xf32> to vector<2x32xf32>
    %269 = vector.extract_strided_slice %263 {offsets = [0, 64], sizes = [2, 32], strides = [1, 1]} : vector<2x96xf32> to vector<2x32xf32>
    %270 = arith.addf %264, %267 : vector<2x32xf32>
    %271 = arith.negf %270 : vector<2x32xf32>
    %272 = math.exp %271 : vector<2x32xf32>
    %cst_65 = arith.constant 1.000000e+00 : f32
    %273 = vector.broadcast %cst_65 : f32 to vector<2x32xf32>
    %274 = arith.addf %273, %272 : vector<2x32xf32>
    %275 = arith.divf %273, %274 : vector<2x32xf32>
    %276 = arith.addf %265, %268 : vector<2x32xf32>
    %277 = arith.negf %276 : vector<2x32xf32>
    %278 = math.exp %277 : vector<2x32xf32>
    %cst_66 = arith.constant 1.000000e+00 : f32
    %279 = vector.broadcast %cst_66 : f32 to vector<2x32xf32>
    %280 = arith.addf %279, %278 : vector<2x32xf32>
    %281 = arith.divf %279, %280 : vector<2x32xf32>
    %282 = arith.mulf %275, %269 : vector<2x32xf32>
    %283 = arith.addf %266, %282 : vector<2x32xf32>
    %284 = math.tanh %283 : vector<2x32xf32>
    %cst_67 = arith.constant 1.000000e+00 : f32
    %285 = vector.broadcast %cst_67 : f32 to vector<2x32xf32>
    %286 = arith.subf %285, %281 : vector<2x32xf32>
    %287 = arith.mulf %286, %284 : vector<2x32xf32>
    %288 = arith.mulf %281, %253 : vector<2x32xf32>
    %289 = arith.addf %287, %288 : vector<2x32xf32>
    %290 = arith.index_cast %c7_i32 : i32 to index
    %c0_68 = arith.constant 0 : index
    %c0_69 = arith.constant 0 : index
    %291 = vector.load %arg4[%290, %c0_68, %c0_69] : memref<8x2x32xf32, #tpu.memory_space<vmem>>, vector<1x2x32xf32>
    %292 = vector.shape_cast %291 : vector<1x2x32xf32> to vector<2x32xf32>
    %293 = vector.shape_cast %289 : vector<2x32xf32> to vector<1x2x32xf32>
    tpu.vector_store %arg4[%290, %c0_68, %c0_69], %293 {strides = array<i32>} : memref<8x2x32xf32, #tpu.memory_space<vmem>>, vector<1x2x32xf32>,
    %c8_i32 = arith.constant 8 : i32
    %c0_70 = arith.constant 0 : index
    %c0_71 = arith.constant 0 : index
    %294 = vector.load %arg5[%c0_70, %c0_71] : memref<2x32xf32, #tpu.memory_space<vmem>>, vector<2x32xf32>
    tpu.vector_store %arg5[%c0_70, %c0_71], %289 {strides = array<i32>} : memref<2x32xf32, #tpu.memory_space<vmem>>, vector<2x32xf32>,
    return
  }
  func.func @transform_0(%arg0: i32) -> (i32, i32, i32) {
    %c0_i32 = arith.constant 0 : i32
    %c0_i32_0 = arith.constant 0 : i32
    %c0_i32_1 = arith.constant 0 : i32
    return %arg0, %c0_i32, %c0_i32_0 : i32, i32, i32
  }
  func.func @transform_1(%arg0: i32) -> (i32, i32) {
    %c0_i32 = arith.constant 0 : i32
    %c0_i32_0 = arith.constant 0 : i32
    %c0_i32_1 = arith.constant 0 : i32
    return %c0_i32, %c0_i32_0 : i32, i32
  }
  func.func @transform_2(%arg0: i32) -> (i32, i32) {
    %c0_i32 = arith.constant 0 : i32
    %c0_i32_0 = arith.constant 0 : i32
    %c0_i32_1 = arith.constant 0 : i32
    return %c0_i32, %c0_i32_0 : i32, i32
  }
  func.func @transform_3(%arg0: i32) -> (i32, i32, i32) {
    %c0_i32 = arith.constant 0 : i32
    %c0_i32_0 = arith.constant 0 : i32
    %c0_i32_1 = arith.constant 0 : i32
    return %arg0, %c0_i32, %c0_i32_0 : i32, i32, i32
  }
}

</mosaic_0001>

<llo_original>
// kernel: tpu_custom_call.1
$region0: #{tpu_custom_call.1}
  #allocation0 [shape = 'u32[]', space=smem, size = 0x4, offset = 0x4, fixed_abs, tag = 'smem constant byte address 0x4 - core index']
  #allocation1 [shape = 'u32[144,128]{1,0:T(1,128)}', space=vmem, size = 0x12000, scoped, tag = 'internal scratch']
  #allocation2 [shape = 'f32[2,32]{1,0:T(2,128)}', space=vmem, size = 0x400, scoped, tag = 'scratch operand']
  %s0 = inlined_call_operand.hbm [shape: f32[8,2,96], index: 0, kind: input, shape index: {}]
  %s1 = inlined_call_operand.hbm [shape: f32[32,96], index: 1, kind: input, shape index: {}]
  %s2 = inlined_call_operand.vmem [shape: f32[1,96], index: 2, kind: input, shape index: {}]
  %s3 = inlined_call_operand.hbm [shape: f32[8,2,32], index: 3, kind: output, shape index: {}]
  %s4 = sld [smem:[#allocation0]]
  $region34: #{tpu_custom_call.1} parent=0
    _
  %s6 = ssub.s32 1, %s4
  %s7 = scalar_select 0, %s6, %s4
  $region1: #{tpu_custom_call.1} parent=0
    #allocation3 [shape = 'u8[8192]{0}', space=vmem, size = 0x2000, scoped, tag = 'input window, operand 0, single buffered']
    #allocation4 [shape = 's32[1]{0}', space=sflag, size = 0x4, scoped, tag = 'scoped memory for tpu_custom_call.1']
    #allocation5 [shape = 's32[1]{0}', space=sflag, size = 0x4, scoped, tag = 'scoped memory for tpu_custom_call.1']
    #allocation6 [shape = 'u8[16384]{0}', space=vmem, size = 0x4000, scoped, tag = 'input window, operand 1, single buffered']
    #allocation7 [shape = 's32[1]{0}', space=sflag, size = 0x4, scoped, tag = 'scoped memory for tpu_custom_call.1']
    #allocation8 [shape = 'u8[8192]{0}', space=vmem, size = 0x2000, scoped, tag = 'output window, operand 0, single buffered']
    %8 = vsyncpa [#allocation4], 0
    %9 = vsyncpa [#allocation7], 0
    %10 = vsyncpa [#allocation5], 0
    // Predicated region
    $region2: #{tpu_custom_call.1} parent=1 // pred_check
      _
    $region3: #{tpu_custom_call.1} parent=1 // pred_check_branch
      %12 = sbr.rel (0) target = $region5
    $region4: #{tpu_custom_call.1} parent=1 // pred_region
      %s14 = ssub.s32 256, 256
      %15 = vsyncadd [#allocation4], %s14
      %s16 = sshll.u32 [#allocation3], 4
      %s17 = int_to_ptr.vmem [resolvable:$true] %s16
      %22 = dma.hbm_to_vmem [thread:$0]  %s0, 256, %s17, [#allocation4], 32, 32, 2
    $region5: #{tpu_custom_call.1} parent=1 // pred_fallthru
      _
    // Predicated region
    $region6: #{tpu_custom_call.1} parent=1 // pred_check
      _
    $region7: #{tpu_custom_call.1} parent=1 // pred_check_branch
      %24 = sbr.rel (0) target = $region9
    $region8: #{tpu_custom_call.1} parent=1 // pred_region
      %s26 = ssub.s32 512, 512
      %27 = vsyncadd [#allocation7], %s26
      %s28 = sshll.u32 [#allocation6], 4
      %s29 = int_to_ptr.vmem [resolvable:$true] %s28
      %34 = dma.hbm_to_vmem [thread:$0]  %s1, 512, %s29, [#allocation7], 128, 128, 8
    $region9: #{tpu_custom_call.1} parent=1 // pred_fallthru
      _
    // Predicated region
    $region10: #{tpu_custom_call.1} parent=1 // pred_check
      _
    $region11: #{tpu_custom_call.1} parent=1 // pred_check_branch
      %36 = sbr.rel (0) target = $region13
    $region12: #{tpu_custom_call.1} parent=1 // pred_region
      _
    $region13: #{tpu_custom_call.1} parent=1 // pred_fallthru
      _
    // Predicated region
    $region14: #{tpu_custom_call.1} parent=1 // pred_check
      _
    $region15: #{tpu_custom_call.1} parent=1 // pred_check_branch
      %38 = sbr.rel (0) target = $region17
    $region16: #{tpu_custom_call.1} parent=1 // pred_region
      %39 = dma.done [#allocation4], 256
    $region17: #{tpu_custom_call.1} parent=1 // pred_fallthru
      _
    // Predicated region
    $region18: #{tpu_custom_call.1} parent=1 // pred_check
      _
    $region19: #{tpu_custom_call.1} parent=1 // pred_check_branch
      %41 = sbr.rel (0) target = $region21
    $region20: #{tpu_custom_call.1} parent=1 // pred_region
      %42 = dma.done [#allocation7], 512
    $region21: #{tpu_custom_call.1} parent=1 // pred_fallthru
      _
    %p43 = scmp.eq.s32.totalorder 0, 0
    // Predicated region
    $region22: #{tpu_custom_call.1} parent=1 // pred_check
      %p44 = pneg %p43
    $region23: #{tpu_custom_call.1} parent=1 // pred_check_branch
      %46 = sbr.rel (%p44) target = $region25
    $region24: #{tpu_custom_call.1} parent=1 // pred_region
      %vm47 = vcmask 254976
      %48 = vst.msk [vmem:[#allocation2] sm:$0x3] %vm47, 0.0
    $region25: #{tpu_custom_call.1} parent=1 // pred_fallthru
      _
    %v49 = vld [vmem:[#allocation6] sm:$0xff]
    %v50 = vld [vmem:[#allocation6 + $0x8] sm:$0xff]
    %v51 = vld [vmem:[#allocation6 + $0x10] sm:$0xff]
    %v52 = vld [vmem:[#allocation6 + $0x18] sm:$0xff]
    %v53 = vld [vmem:[%s2] sm:$0x1]
    %v54 = vld [vmem:[#allocation2] sm:$0x3]
    %v55 = vld [vmem:[#allocation3] sm:$0x3]
    %v57 = vlaneseq
    %v58 = vshrl.u32 %v57, 7
    %v59 = vsub.s32 0, %v58
    %v60 = vrot.slane %v53, %v59
    %vm62 = vcmask 261120
    %v64 = vsel %vm62, %v54, 0
    %66 = vmatprep.subr.mxu0 0.0
    %67 = vmatpush1.msra.mxu0 %v49
    %68 = vmatprep.subr.mxu0 0.0
    %69 = vmatpush1.msra.mxu0 %v50
    %70 = vmatprep.subr.mxu0 0.0
    %71 = vmatpush1.msra.mxu0 %v51
    %72 = vmatprep.subr.mxu0 0.0
    %73 = vmatpush1.msra.mxu0 %v52
    %74 = vmatprep.subr.mxu0 0.0
    %75 = vmatpush1.msra.mxu0 0.0
    %76 = vmatprep.subr.mxu0 0.0
    %77 = vmatpush1.msra.mxu0 0.0
    %78 = vmatprep.subr.mxu0 0.0
    %79 = vmatpush1.msra.mxu0 0.0
    %80 = vmatprep.subr.mxu0 0.0
    %81 = vmatpush1.msra.mxu0 0.0
    %82 = vmatprep.subr.mxu0 0.0
    %83 = vmatpush1.msra.mxu0 0.0
    %84 = vmatprep.subr.mxu0 0.0
    %85 = vmatpush1.msra.mxu0 0.0
    %86 = vmatprep.subr.mxu0 0.0
    %87 = vmatpush1.msra.mxu0 0.0
    %88 = vmatprep.subr.mxu0 0.0
    %89 = vmatpush1.msra.mxu0 0.0
    %90 = vmatprep.subr.mxu0 0.0
    %91 = vmatpush1.msra.mxu0 0.0
    %92 = vmatprep.subr.mxu0 0.0
    %93 = vmatpush1.msra.mxu0 0.0
    %94 = vmatprep.subr.mxu0 0.0
    %95 = vmatpush1.msra.mxu0 0.0
    %96 = vmatprep.subr.mxu0 0.0
    %97 = vmatpush1.msra.mxu0 0.0
    %98 = vmatprep.subr.mxu0 0.0
    %99 = vmatpush1.msra.mxu0 0.0
    %100 = vmatprep.subr.mxu0 0.0
    %101 = vmatpush1.msra.mxu0 0.0
    %102 = vmatprep.subr.mxu0 0.0
    %103 = vmatpush1.msra.mxu0 0.0
    %104 = vmatprep.subr.mxu0 0.0
    %105 = vmatpush1.msra.mxu0 0.0
    %106 = vmatprep.subr.mxu0 0.0
    %107 = vmatpush1.msra.mxu0 0.0
    %108 = vmatprep.subr.mxu0 0.0
    %109 = vmatpush1.msra.mxu0 0.0
    %110 = vmatprep.subr.mxu0 0.0
    %111 = vmatpush1.msra.mxu0 0.0
    %112 = vmatprep.subr.mxu0 0.0
    %113 = vmatpush1.msra.mxu0 0.0
    %114 = vmatprep.subr.mxu0 0.0
    %115 = vmatpush1.msra.mxu0 0.0
    %116 = vmatprep.subr.mxu0 0.0
    %117 = vmatpush1.msra.mxu0 0.0
    %118 = vmatprep.subr.mxu0 0.0
    %119 = vmatpush1.msra.mxu0 0.0
    %120 = vmatprep.subr.mxu0 0.0
    %121 = vmatpush1.msra.mxu0 0.0
    %122 = vmatprep.subr.mxu0 0.0
    %123 = vmatpush1.msra.mxu0 0.0
    %124 = vmatprep.subr.mxu0 0.0
    %125 = vmatpush1.msra.mxu0 0.0
    %126 = vmatprep.subr.mxu0 0.0
    %127 = vmatpush1.msra.mxu0 0.0
    %128 = vmatprep.subr.mxu0 0.0
    %129 = vmatpush1.msra.mxu0 0.0
    %130 = vmatprep.mubr.f32.mxu0 0.0
    %131 = vmatmul.mubr.f32.gmra.mrb[0].mxu0 %v64
    %v132 = vpop.f32.mrb[0].mxu0
    %v133 = vadd.f32 %v60, %v132
    %v134 = vpop.f32.mrb[0].mxu0
    %135 = vdwg.mxu0
    %v136 = vadd.f32 %v55, %v133
    %v137 = vxor.u32 %v136, 2147483648
    %v138 = vmul.f32 %v137, 1.442695
    %v139 = vpow.pop %v138
    %v140 = vadd.f32 %v139, 1.0
    %v141 = vrcp.pop %v140
    %v142 = vmul.f32 1.0, %v141
    %144 = vrot.lane.b32.xlu0 %v133, 64
    %v145 = vpop.permute.xlu0 %144
    %v147 = vmul.f32 %v142, %v145
    %149 = vrot.lane.b32.xlu0 %v147, 64
    %v150 = vpop.permute.xlu0 %149
    %v152 = vadd.f32 %v55, %v150
    %v153 = vtanh.pop %v152
    %v154 = vsub.f32 1.0, %v142
    %156 = vrot.lane.b32.xlu0 %v153, 96
    %v157 = vpop.permute.xlu0 %156
    %v159 = vmul.f32 %v154, %v157
    %160 = vrot.lane.b32.xlu0 %v54, 32
    %v161 = vpop.permute.xlu0 %160
    %v163 = vmul.f32 %v142, %v161
    %v164 = vadd.f32 %v159, %v163
    %166 = vrot.lane.b32.xlu0 %v164, 96
    %v167 = vpop.permute.xlu0 %166
    %vm169 = vcmask 254976
    %170 = vst.msk [vmem:[#allocation8] sm:$0x3] %vm169, %v167
    %s171 = scalar_lea.vmem [#allocation3], 2
    %v172 = vld [vmem:[%s171] sm:$0x3]
    %v173 = vsel %vm62, %v167, 0
    %175 = vmatprep.subr.mxu0 0.0
    %176 = vmatpush1.msra.mxu0 %v49
    %177 = vmatprep.subr.mxu0 0.0
    %178 = vmatpush1.msra.mxu0 %v50
    %179 = vmatprep.subr.mxu0 0.0
    %180 = vmatpush1.msra.mxu0 %v51
    %181 = vmatprep.subr.mxu0 0.0
    %182 = vmatpush1.msra.mxu0 %v52
    %183 = vmatprep.subr.mxu0 0.0
    %184 = vmatpush1.msra.mxu0 0.0
    %185 = vmatprep.subr.mxu0 0.0
    %186 = vmatpush1.msra.mxu0 0.0
    %187 = vmatprep.subr.mxu0 0.0
    %188 = vmatpush1.msra.mxu0 0.0
    %189 = vmatprep.subr.mxu0 0.0
    %190 = vmatpush1.msra.mxu0 0.0
    %191 = vmatprep.subr.mxu0 0.0
    %192 = vmatpush1.msra.mxu0 0.0
    %193 = vmatprep.subr.mxu0 0.0
    %194 = vmatpush1.msra.mxu0 0.0
    %195 = vmatprep.subr.mxu0 0.0
    %196 = vmatpush1.msra.mxu0 0.0
    %197 = vmatprep.subr.mxu0 0.0
    %198 = vmatpush1.msra.mxu0 0.0
    %199 = vmatprep.subr.mxu0 0.0
    %200 = vmatpush1.msra.mxu0 0.0
    %201 = vmatprep.subr.mxu0 0.0
    %202 = vmatpush1.msra.mxu0 0.0
    %203 = vmatprep.subr.mxu0 0.0
    %204 = vmatpush1.msra.mxu0 0.0
    %205 = vmatprep.subr.mxu0 0.0
    %206 = vmatpush1.msra.mxu0 0.0
    %207 = vmatprep.subr.mxu0 0.0
    %208 = vmatpush1.msra.mxu0 0.0
    %209 = vmatprep.subr.mxu0 0.0
    %210 = vmatpush1.msra.mxu0 0.0
    %211 = vmatprep.subr.mxu0 0.0
    %212 = vmatpush1.msra.mxu0 0.0
    %213 = vmatprep.subr.mxu0 0.0
    %214 = vmatpush1.msra.mxu0 0.0
    %215 = vmatprep.subr.mxu0 0.0
    %216 = vmatpush1.msra.mxu0 0.0
    %217 = vmatprep.subr.mxu0 0.0
    %218 = vmatpush1.msra.mxu0 0.0
    %219 = vmatprep.subr.mxu0 0.0
    %220 = vmatpush1.msra.mxu0 0.0
    %221 = vmatprep.subr.mxu0 0.0
    %222 = vmatpush1.msra.mxu0 0.0
    %223 = vmatprep.subr.mxu0 0.0
    %224 = vmatpush1.msra.mxu0 0.0
    %225 = vmatprep.subr.mxu0 0.0
    %226 = vmatpush1.msra.mxu0 0.0
    %227 = vmatprep.subr.mxu0 0.0
    %228 = vmatpush1.msra.mxu0 0.0
    %229 = vmatprep.subr.mxu0 0.0
    %230 = vmatpush1.msra.mxu0 0.0
    %231 = vmatprep.subr.mxu0 0.0
    %232 = vmatpush1.msra.mxu0 0.0
    %233 = vmatprep.subr.mxu0 0.0
    %234 = vmatpush1.msra.mxu0 0.0
    %235 = vmatprep.subr.mxu0 0.0
    %236 = vmatpush1.msra.mxu0 0.0
    %237 = vmatprep.subr.mxu0 0.0
    %238 = vmatpush1.msra.mxu0 0.0
    %239 = vmatprep.mubr.f32.mxu0 0.0
    %240 = vmatmul.mubr.f32.gmra.mrb[0].mxu0 %v173
    %v241 = vpop.f32.mrb[0].mxu0
    %v242 = vadd.f32 %v60, %v241
    %v243 = vpop.f32.mrb[0].mxu0
    %244 = vdwg.mxu0
    %v245 = vadd.f32 %v172, %v242
    %v246 = vxor.u32 %v245, 2147483648
    %v247 = vmul.f32 %v246, 1.442695
    %v248 = vpow.pop %v247
    %v249 = vadd.f32 %v248, 1.0
    %v250 = vrcp.pop %v249
    %v251 = vmul.f32 1.0, %v250
    %253 = vrot.lane.b32.xlu0 %v242, 64
    %v254 = vpop.permute.xlu0 %253
    %v256 = vmul.f32 %v251, %v254
    %258 = vrot.lane.b32.xlu0 %v256, 64
    %v259 = vpop.permute.xlu0 %258
    %v261 = vadd.f32 %v172, %v259
    %v262 = vtanh.pop %v261
    %v263 = vsub.f32 1.0, %v251
    %265 = vrot.lane.b32.xlu0 %v262, 96
    %v266 = vpop.permute.xlu0 %265
    %v268 = vmul.f32 %v263, %v266
    %v269 = vmul.f32 %v251, %v164
    %v270 = vadd.f32 %v268, %v269
    %272 = vrot.lane.b32.xlu0 %v270, 96
    %v273 = vpop.permute.xlu0 %272
    %s275 = scalar_lea.vmem [#allocation8], 2
    %276 = vst.msk [vmem:[%s275] sm:$0x3] %vm169, %v273
    %s277 = scalar_lea.vmem [#allocation3], 4
    %v278 = vld [vmem:[%s277] sm:$0x3]
    %v279 = vsel %vm62, %v273, 0
    %281 = vmatprep.subr.mxu0 0.0
    %282 = vmatpush1.msra.mxu0 %v49
    %283 = vmatprep.subr.mxu0 0.0
    %284 = vmatpush1.msra.mxu0 %v50
    %285 = vmatprep.subr.mxu0 0.0
    %286 = vmatpush1.msra.mxu0 %v51
    %287 = vmatprep.subr.mxu0 0.0
    %288 = vmatpush1.msra.mxu0 %v52
    %289 = vmatprep.subr.mxu0 0.0
    %290 = vmatpush1.msra.mxu0 0.0
    %291 = vmatprep.subr.mxu0 0.0
    %292 = vmatpush1.msra.mxu0 0.0
    %293 = vmatprep.subr.mxu0 0.0
    %294 = vmatpush1.msra.mxu0 0.0
    %295 = vmatprep.subr.mxu0 0.0
    %296 = vmatpush1.msra.mxu0 0.0
    %297 = vmatprep.subr.mxu0 0.0
    %298 = vmatpush1.msra.mxu0 0.0
    %299 = vmatprep.subr.mxu0 0.0
    %300 = vmatpush1.msra.mxu0 0.0
    %301 = vmatprep.subr.mxu0 0.0
    %302 = vmatpush1.msra.mxu0 0.0
    %303 = vmatprep.subr.mxu0 0.0
    %304 = vmatpush1.msra.mxu0 0.0
    %305 = vmatprep.subr.mxu0 0.0
    %306 = vmatpush1.msra.mxu0 0.0
    %307 = vmatprep.subr.mxu0 0.0
    %308 = vmatpush1.msra.mxu0 0.0
    %309 = vmatprep.subr.mxu0 0.0
    %310 = vmatpush1.msra.mxu0 0.0
    %311 = vmatprep.subr.mxu0 0.0
    %312 = vmatpush1.msra.mxu0 0.0
    %313 = vmatprep.subr.mxu0 0.0
    %314 = vmatpush1.msra.mxu0 0.0
    %315 = vmatprep.subr.mxu0 0.0
    %316 = vmatpush1.msra.mxu0 0.0
    %317 = vmatprep.subr.mxu0 0.0
    %318 = vmatpush1.msra.mxu0 0.0
    %319 = vmatprep.subr.mxu0 0.0
    %320 = vmatpush1.msra.mxu0 0.0
    %321 = vmatprep.subr.mxu0 0.0
    %322 = vmatpush1.msra.mxu0 0.0
    %323 = vmatprep.subr.mxu0 0.0
    %324 = vmatpush1.msra.mxu0 0.0
    %325 = vmatprep.subr.mxu0 0.0
    %326 = vmatpush1.msra.mxu0 0.0
    %327 = vmatprep.subr.mxu0 0.0
    %328 = vmatpush1.msra.mxu0 0.0
    %329 = vmatprep.subr.mxu0 0.0
    %330 = vmatpush1.msra.mxu0 0.0
    %331 = vmatprep.subr.mxu0 0.0
    %332 = vmatpush1.msra.mxu0 0.0
    %333 = vmatprep.subr.mxu0 0.0
    %334 = vmatpush1.msra.mxu0 0.0
    %335 = vmatprep.subr.mxu0 0.0
    %336 = vmatpush1.msra.mxu0 0.0
    %337 = vmatprep.subr.mxu0 0.0
    %338 = vmatpush1.msra.mxu0 0.0
    %339 = vmatprep.subr.mxu0 0.0
    %340 = vmatpush1.msra.mxu0 0.0
    %341 = vmatprep.subr.mxu0 0.0
    %342 = vmatpush1.msra.mxu0 0.0
    %343 = vmatprep.subr.mxu0 0.0
    %344 = vmatpush1.msra.mxu0 0.0
    %345 = vmatprep.mubr.f32.mxu0 0.0
    %346 = vmatmul.mubr.f32.gmra.mrb[0].mxu0 %v279
    %v347 = vpop.f32.mrb[0].mxu0
    %v348 = vadd.f32 %v60, %v347
    %v349 = vpop.f32.mrb[0].mxu0
    %350 = vdwg.mxu0
    %v351 = vadd.f32 %v278, %v348
    %v352 = vxor.u32 %v351, 2147483648
    %v353 = vmul.f32 %v352, 1.442695
    %v354 = vpow.pop %v353
    %v355 = vadd.f32 %v354, 1.0
    %v356 = vrcp.pop %v355
    %v357 = vmul.f32 1.0, %v356
    %359 = vrot.lane.b32.xlu0 %v348, 64
    %v360 = vpop.permute.xlu0 %359
    %v362 = vmul.f32 %v357, %v360
    %364 = vrot.lane.b32.xlu0 %v362, 64
    %v365 = vpop.permute.xlu0 %364
    %v367 = vadd.f32 %v278, %v365
    %v368 = vtanh.pop %v367
    %v369 = vsub.f32 1.0, %v357
    %371 = vrot.lane.b32.xlu0 %v368, 96
    %v372 = vpop.permute.xlu0 %371
    %v374 = vmul.f32 %v369, %v372
    %v375 = vmul.f32 %v357, %v270
    %v376 = vadd.f32 %v374, %v375
    %378 = vrot.lane.b32.xlu0 %v376, 96
    %v379 = vpop.permute.xlu0 %378
    %s381 = scalar_lea.vmem [#allocation8], 4
    %382 = vst.msk [vmem:[%s381] sm:$0x3] %vm169, %v379
    %s383 = scalar_lea.vmem [#allocation3], 6
    %v384 = vld [vmem:[%s383] sm:$0x3]
    %v385 = vsel %vm62, %v379, 0
    %387 = vmatprep.subr.mxu0 0.0
    %388 = vmatpush1.msra.mxu0 %v49
    %389 = vmatprep.subr.mxu0 0.0
    %390 = vmatpush1.msra.mxu0 %v50
    %391 = vmatprep.subr.mxu0 0.0
    %392 = vmatpush1.msra.mxu0 %v51
    %393 = vmatprep.subr.mxu0 0.0
    %394 = vmatpush1.msra.mxu0 %v52
    %395 = vmatprep.subr.mxu0 0.0
    %396 = vmatpush1.msra.mxu0 0.0
    %397 = vmatprep.subr.mxu0 0.0
    %398 = vmatpush1.msra.mxu0 0.0
    %399 = vmatprep.subr.mxu0 0.0
    %400 = vmatpush1.msra.mxu0 0.0
    %401 = vmatprep.subr.mxu0 0.0
    %402 = vmatpush1.msra.mxu0 0.0
    %403 = vmatprep.subr.mxu0 0.0
    %404 = vmatpush1.msra.mxu0 0.0
    %405 = vmatprep.subr.mxu0 0.0
    %406 = vmatpush1.msra.mxu0 0.0
    %407 = vmatprep.subr.mxu0 0.0
    %408 = vmatpush1.msra.mxu0 0.0
    %409 = vmatprep.subr.mxu0 0.0
    %410 = vmatpush1.msra.mxu0 0.0
    %411 = vmatprep.subr.mxu0 0.0
    %412 = vmatpush1.msra.mxu0 0.0
    %413 = vmatprep.subr.mxu0 0.0
    %414 = vmatpush1.msra.mxu0 0.0
    %415 = vmatprep.subr.mxu0 0.0
    %416 = vmatpush1.msra.mxu0 0.0
    %417 = vmatprep.subr.mxu0 0.0
    %418 = vmatpush1.msra.mxu0 0.0
    %419 = vmatprep.subr.mxu0 0.0
    %420 = vmatpush1.msra.mxu0 0.0
    %421 = vmatprep.subr.mxu0 0.0
    %422 = vmatpush1.msra.mxu0 0.0
    %423 = vmatprep.subr.mxu0 0.0
    %424 = vmatpush1.msra.mxu0 0.0
    %425 = vmatprep.subr.mxu0 0.0
    %426 = vmatpush1.msra.mxu0 0.0
    %427 = vmatprep.subr.mxu0 0.0
    %428 = vmatpush1.msra.mxu0 0.0
    %429 = vmatprep.subr.mxu0 0.0
    %430 = vmatpush1.msra.mxu0 0.0
    %431 = vmatprep.subr.mxu0 0.0
    %432 = vmatpush1.msra.mxu0 0.0
    %433 = vmatprep.subr.mxu0 0.0
    %434 = vmatpush1.msra.mxu0 0.0
    %435 = vmatprep.subr.mxu0 0.0
    %436 = vmatpush1.msra.mxu0 0.0
    %437 = vmatprep.subr.mxu0 0.0
    %438 = vmatpush1.msra.mxu0 0.0
    %439 = vmatprep.subr.mxu0 0.0
    %440 = vmatpush1.msra.mxu0 0.0
    %441 = vmatprep.subr.mxu0 0.0
    %442 = vmatpush1.msra.mxu0 0.0
    %443 = vmatprep.subr.mxu0 0.0
    %444 = vmatpush1.msra.mxu0 0.0
    %445 = vmatprep.subr.mxu0 0.0
    %446 = vmatpush1.msra.mxu0 0.0
    %447 = vmatprep.subr.mxu0 0.0
    %448 = vmatpush1.msra.mxu0 0.0
    %449 = vmatprep.subr.mxu0 0.0
    %450 = vmatpush1.msra.mxu0 0.0
    %451 = vmatprep.mubr.f32.mxu0 0.0
    %452 = vmatmul.mubr.f32.gmra.mrb[0].mxu0 %v385
    %v453 = vpop.f32.mrb[0].mxu0
    %v454 = vadd.f32 %v60, %v453
    %v455 = vpop.f32.mrb[0].mxu0
    %456 = vdwg.mxu0
    %v457 = vadd.f32 %v384, %v454
    %v458 = vxor.u32 %v457, 2147483648
    %v459 = vmul.f32 %v458, 1.442695
    %v460 = vpow.pop %v459
    %v461 = vadd.f32 %v460, 1.0
    %v462 = vrcp.pop %v461
    %v463 = vmul.f32 1.0, %v462
    %465 = vrot.lane.b32.xlu0 %v454, 64
    %v466 = vpop.permute.xlu0 %465
    %v468 = vmul.f32 %v463, %v466
    %470 = vrot.lane.b32.xlu0 %v468, 64
    %v471 = vpop.permute.xlu0 %470
    %v473 = vadd.f32 %v384, %v471
    %v474 = vtanh.pop %v473
    %v475 = vsub.f32 1.0, %v463
    %477 = vrot.lane.b32.xlu0 %v474, 96
    %v478 = vpop.permute.xlu0 %477
    %v480 = vmul.f32 %v475, %v478
    %v481 = vmul.f32 %v463, %v376
    %v482 = vadd.f32 %v480, %v481
    %484 = vrot.lane.b32.xlu0 %v482, 96
    %v485 = vpop.permute.xlu0 %484
    %s487 = scalar_lea.vmem [#allocation8], 6
    %488 = vst.msk [vmem:[%s487] sm:$0x3] %vm169, %v485
    %s489 = scalar_lea.vmem [#allocation3], 8
    %v490 = vld [vmem:[%s489] sm:$0x3]
    %v491 = vsel %vm62, %v485, 0
    %493 = vmatprep.subr.mxu0 0.0
    %494 = vmatpush1.msra.mxu0 %v49
    %495 = vmatprep.subr.mxu0 0.0
    %496 = vmatpush1.msra.mxu0 %v50
    %497 = vmatprep.subr.mxu0 0.0
    %498 = vmatpush1.msra.mxu0 %v51
    %499 = vmatprep.subr.mxu0 0.0
    %500 = vmatpush1.msra.mxu0 %v52
    %501 = vmatprep.subr.mxu0 0.0
    %502 = vmatpush1.msra.mxu0 0.0
    %503 = vmatprep.subr.mxu0 0.0
    %504 = vmatpush1.msra.mxu0 0.0
    %505 = vmatprep.subr.mxu0 0.0
    %506 = vmatpush1.msra.mxu0 0.0
    %507 = vmatprep.subr.mxu0 0.0
    %508 = vmatpush1.msra.mxu0 0.0
    %509 = vmatprep.subr.mxu0 0.0
    %510 = vmatpush1.msra.mxu0 0.0
    %511 = vmatprep.subr.mxu0 0.0
    %512 = vmatpush1.msra.mxu0 0.0
    %513 = vmatprep.subr.mxu0 0.0
    %514 = vmatpush1.msra.mxu0 0.0
    %515 = vmatprep.subr.mxu0 0.0
    %516 = vmatpush1.msra.mxu0 0.0
    %517 = vmatprep.subr.mxu0 0.0
    %518 = vmatpush1.msra.mxu0 0.0
    %519 = vmatprep.subr.mxu0 0.0
    %520 = vmatpush1.msra.mxu0 0.0
    %521 = vmatprep.subr.mxu0 0.0
    %522 = vmatpush1.msra.mxu0 0.0
    %523 = vmatprep.subr.mxu0 0.0
    %524 = vmatpush1.msra.mxu0 0.0
    %525 = vmatprep.subr.mxu0 0.0
    %526 = vmatpush1.msra.mxu0 0.0
    %527 = vmatprep.subr.mxu0 0.0
    %528 = vmatpush1.msra.mxu0 0.0
    %529 = vmatprep.subr.mxu0 0.0
    %530 = vmatpush1.msra.mxu0 0.0
    %531 = vmatprep.subr.mxu0 0.0
    %532 = vmatpush1.msra.mxu0 0.0
    %533 = vmatprep.subr.mxu0 0.0
    %534 = vmatpush1.msra.mxu0 0.0
    %535 = vmatprep.subr.mxu0 0.0
    %536 = vmatpush1.msra.mxu0 0.0
    %537 = vmatprep.subr.mxu0 0.0
    %538 = vmatpush1.msra.mxu0 0.0
    %539 = vmatprep.subr.mxu0 0.0
    %540 = vmatpush1.msra.mxu0 0.0
    %541 = vmatprep.subr.mxu0 0.0
    %542 = vmatpush1.msra.mxu0 0.0
    %543 = vmatprep.subr.mxu0 0.0
    %544 = vmatpush1.msra.mxu0 0.0
    %545 = vmatprep.subr.mxu0 0.0
    %546 = vmatpush1.msra.mxu0 0.0
    %547 = vmatprep.subr.mxu0 0.0
    %548 = vmatpush1.msra.mxu0 0.0
    %549 = vmatprep.subr.mxu0 0.0
    %550 = vmatpush1.msra.mxu0 0.0
    %551 = vmatprep.subr.mxu0 0.0
    %552 = vmatpush1.msra.mxu0 0.0
    %553 = vmatprep.subr.mxu0 0.0
    %554 = vmatpush1.msra.mxu0 0.0
    %555 = vmatprep.subr.mxu0 0.0
    %556 = vmatpush1.msra.mxu0 0.0
    %557 = vmatprep.mubr.f32.mxu0 0.0
    %558 = vmatmul.mubr.f32.gmra.mrb[0].mxu0 %v491
    %v559 = vpop.f32.mrb[0].mxu0
    %v560 = vadd.f32 %v60, %v559
    %v561 = vpop.f32.mrb[0].mxu0
    %562 = vdwg.mxu0
    %v563 = vadd.f32 %v490, %v560
    %v564 = vxor.u32 %v563, 2147483648
    %v565 = vmul.f32 %v564, 1.442695
    %v566 = vpow.pop %v565
    %v567 = vadd.f32 %v566, 1.0
    %v568 = vrcp.pop %v567
    %v569 = vmul.f32 1.0, %v568
    %571 = vrot.lane.b32.xlu0 %v560, 64
    %v572 = vpop.permute.xlu0 %571
    %v574 = vmul.f32 %v569, %v572
    %576 = vrot.lane.b32.xlu0 %v574, 64
    %v577 = vpop.permute.xlu0 %576
    %v579 = vadd.f32 %v490, %v577
    %v580 = vtanh.pop %v579
    %v581 = vsub.f32 1.0, %v569
    %583 = vrot.lane.b32.xlu0 %v580, 96
    %v584 = vpop.permute.xlu0 %583
    %v586 = vmul.f32 %v581, %v584
    %v587 = vmul.f32 %v569, %v482
    %v588 = vadd.f32 %v586, %v587
    %590 = vrot.lane.b32.xlu0 %v588, 96
    %v591 = vpop.permute.xlu0 %590
    %s593 = scalar_lea.vmem [#allocation8], 8
    %594 = vst.msk [vmem:[%s593] sm:$0x3] %vm169, %v591
    %s595 = scalar_lea.vmem [#allocation3], 10
    %v596 = vld [vmem:[%s595] sm:$0x3]
    %v597 = vsel %vm62, %v591, 0
    %599 = vmatprep.subr.mxu0 0.0
    %600 = vmatpush1.msra.mxu0 %v49
    %601 = vmatprep.subr.mxu0 0.0
    %602 = vmatpush1.msra.mxu0 %v50
    %603 = vmatprep.subr.mxu0 0.0
    %604 = vmatpush1.msra.mxu0 %v51
    %605 = vmatprep.subr.mxu0 0.0
    %606 = vmatpush1.msra.mxu0 %v52
    %607 = vmatprep.subr.mxu0 0.0
    %608 = vmatpush1.msra.mxu0 0.0
    %609 = vmatprep.subr.mxu0 0.0
    %610 = vmatpush1.msra.mxu0 0.0
    %611 = vmatprep.subr.mxu0 0.0
    %612 = vmatpush1.msra.mxu0 0.0
    %613 = vmatprep.subr.mxu0 0.0
    %614 = vmatpush1.msra.mxu0 0.0
    %615 = vmatprep.subr.mxu0 0.0
    %616 = vmatpush1.msra.mxu0 0.0
    %617 = vmatprep.subr.mxu0 0.0
    %618 = vmatpush1.msra.mxu0 0.0
    %619 = vmatprep.subr.mxu0 0.0
    %620 = vmatpush1.msra.mxu0 0.0
    %621 = vmatprep.subr.mxu0 0.0
    %622 = vmatpush1.msra.mxu0 0.0
    %623 = vmatprep.subr.mxu0 0.0
    %624 = vmatpush1.msra.mxu0 0.0
    %625 = vmatprep.subr.mxu0 0.0
    %626 = vmatpush1.msra.mxu0 0.0
    %627 = vmatprep.subr.mxu0 0.0
    %628 = vmatpush1.msra.mxu0 0.0
    %629 = vmatprep.subr.mxu0 0.0
    %630 = vmatpush1.msra.mxu0 0.0
    %631 = vmatprep.subr.mxu0 0.0
    %632 = vmatpush1.msra.mxu0 0.0
    %633 = vmatprep.subr.mxu0 0.0
    %634 = vmatpush1.msra.mxu0 0.0
    %635 = vmatprep.subr.mxu0 0.0
    %636 = vmatpush1.msra.mxu0 0.0
    %637 = vmatprep.subr.mxu0 0.0
    %638 = vmatpush1.msra.mxu0 0.0
    %639 = vmatprep.subr.mxu0 0.0
    %640 = vmatpush1.msra.mxu0 0.0
    %641 = vmatprep.subr.mxu0 0.0
    %642 = vmatpush1.msra.mxu0 0.0
    %643 = vmatprep.subr.mxu0 0.0
    %644 = vmatpush1.msra.mxu0 0.0
    %645 = vmatprep.subr.mxu0 0.0
    %646 = vmatpush1.msra.mxu0 0.0
    %647 = vmatprep.subr.mxu0 0.0
    %648 = vmatpush1.msra.mxu0 0.0
    %649 = vmatprep.subr.mxu0 0.0
    %650 = vmatpush1.msra.mxu0 0.0
    %651 = vmatprep.subr.mxu0 0.0
    %652 = vmatpush1.msra.mxu0 0.0
    %653 = vmatprep.subr.mxu0 0.0
    %654 = vmatpush1.msra.mxu0 0.0
    %655 = vmatprep.subr.mxu0 0.0
    %656 = vmatpush1.msra.mxu0 0.0
    %657 = vmatprep.subr.mxu0 0.0
    %658 = vmatpush1.msra.mxu0 0.0
    %659 = vmatprep.subr.mxu0 0.0
    %660 = vmatpush1.msra.mxu0 0.0
    %661 = vmatprep.subr.mxu0 0.0
    %662 = vmatpush1.msra.mxu0 0.0
    %663 = vmatprep.mubr.f32.mxu0 0.0
    %664 = vmatmul.mubr.f32.gmra.mrb[0].mxu0 %v597
    %v665 = vpop.f32.mrb[0].mxu0
    %v666 = vadd.f32 %v60, %v665
    %v667 = vpop.f32.mrb[0].mxu0
    %668 = vdwg.mxu0
    %v669 = vadd.f32 %v596, %v666
    %v670 = vxor.u32 %v669, 2147483648
    %v671 = vmul.f32 %v670, 1.442695
    %v672 = vpow.pop %v671
    %v673 = vadd.f32 %v672, 1.0
    %v674 = vrcp.pop %v673
    %v675 = vmul.f32 1.0, %v674
    %677 = vrot.lane.b32.xlu0 %v666, 64
    %v678 = vpop.permute.xlu0 %677
    %v680 = vmul.f32 %v675, %v678
    %682 = vrot.lane.b32.xlu0 %v680, 64
    %v683 = vpop.permute.xlu0 %682
    %v685 = vadd.f32 %v596, %v683
    %v686 = vtanh.pop %v685
    %v687 = vsub.f32 1.0, %v675
    %689 = vrot.lane.b32.xlu0 %v686, 96
    %v690 = vpop.permute.xlu0 %689
    %v692 = vmul.f32 %v687, %v690
    %v693 = vmul.f32 %v675, %v588
    %v694 = vadd.f32 %v692, %v693
    %696 = vrot.lane.b32.xlu0 %v694, 96
    %v697 = vpop.permute.xlu0 %696
    %s699 = scalar_lea.vmem [#allocation8], 10
    %700 = vst.msk [vmem:[%s699] sm:$0x3] %vm169, %v697
    %s701 = scalar_lea.vmem [#allocation3], 12
    %v702 = vld [vmem:[%s701] sm:$0x3]
    %v703 = vsel %vm62, %v697, 0
    %705 = vmatprep.subr.mxu0 0.0
    %706 = vmatpush1.msra.mxu0 %v49
    %707 = vmatprep.subr.mxu0 0.0
    %708 = vmatpush1.msra.mxu0 %v50
    %709 = vmatprep.subr.mxu0 0.0
    %710 = vmatpush1.msra.mxu0 %v51
    %711 = vmatprep.subr.mxu0 0.0
    %712 = vmatpush1.msra.mxu0 %v52
    %713 = vmatprep.subr.mxu0 0.0
    %714 = vmatpush1.msra.mxu0 0.0
    %715 = vmatprep.subr.mxu0 0.0
    %716 = vmatpush1.msra.mxu0 0.0
    %717 = vmatprep.subr.mxu0 0.0
    %718 = vmatpush1.msra.mxu0 0.0
    %719 = vmatprep.subr.mxu0 0.0
    %720 = vmatpush1.msra.mxu0 0.0
    %721 = vmatprep.subr.mxu0 0.0
    %722 = vmatpush1.msra.mxu0 0.0
    %723 = vmatprep.subr.mxu0 0.0
    %724 = vmatpush1.msra.mxu0 0.0
    %725 = vmatprep.subr.mxu0 0.0
    %726 = vmatpush1.msra.mxu0 0.0
    %727 = vmatprep.subr.mxu0 0.0
    %728 = vmatpush1.msra.mxu0 0.0
    %729 = vmatprep.subr.mxu0 0.0
    %730 = vmatpush1.msra.mxu0 0.0
    %731 = vmatprep.subr.mxu0 0.0
    %732 = vmatpush1.msra.mxu0 0.0
    %733 = vmatprep.subr.mxu0 0.0
    %734 = vmatpush1.msra.mxu0 0.0
    %735 = vmatprep.subr.mxu0 0.0
    %736 = vmatpush1.msra.mxu0 0.0
    %737 = vmatprep.subr.mxu0 0.0
    %738 = vmatpush1.msra.mxu0 0.0
    %739 = vmatprep.subr.mxu0 0.0
    %740 = vmatpush1.msra.mxu0 0.0
    %741 = vmatprep.subr.mxu0 0.0
    %742 = vmatpush1.msra.mxu0 0.0
    %743 = vmatprep.subr.mxu0 0.0
    %744 = vmatpush1.msra.mxu0 0.0
    %745 = vmatprep.subr.mxu0 0.0
    %746 = vmatpush1.msra.mxu0 0.0
    %747 = vmatprep.subr.mxu0 0.0
    %748 = vmatpush1.msra.mxu0 0.0
    %749 = vmatprep.subr.mxu0 0.0
    %750 = vmatpush1.msra.mxu0 0.0
    %751 = vmatprep.subr.mxu0 0.0
    %752 = vmatpush1.msra.mxu0 0.0
    %753 = vmatprep.subr.mxu0 0.0
    %754 = vmatpush1.msra.mxu0 0.0
    %755 = vmatprep.subr.mxu0 0.0
    %756 = vmatpush1.msra.mxu0 0.0
    %757 = vmatprep.subr.mxu0 0.0
    %758 = vmatpush1.msra.mxu0 0.0
    %759 = vmatprep.subr.mxu0 0.0
    %760 = vmatpush1.msra.mxu0 0.0
    %761 = vmatprep.subr.mxu0 0.0
    %762 = vmatpush1.msra.mxu0 0.0
    %763 = vmatprep.subr.mxu0 0.0
    %764 = vmatpush1.msra.mxu0 0.0
    %765 = vmatprep.subr.mxu0 0.0
    %766 = vmatpush1.msra.mxu0 0.0
    %767 = vmatprep.subr.mxu0 0.0
    %768 = vmatpush1.msra.mxu0 0.0
    %769 = vmatprep.mubr.f32.mxu0 0.0
    %770 = vmatmul.mubr.f32.gmra.mrb[0].mxu0 %v703
    %v771 = vpop.f32.mrb[0].mxu0
    %v772 = vadd.f32 %v60, %v771
    %v773 = vpop.f32.mrb[0].mxu0
    %774 = vdwg.mxu0
    %v775 = vadd.f32 %v702, %v772
    %v776 = vxor.u32 %v775, 2147483648
    %v777 = vmul.f32 %v776, 1.442695
    %v778 = vpow.pop %v777
    %v779 = vadd.f32 %v778, 1.0
    %v780 = vrcp.pop %v779
    %v781 = vmul.f32 1.0, %v780
    %783 = vrot.lane.b32.xlu0 %v772, 64
    %v784 = vpop.permute.xlu0 %783
    %v786 = vmul.f32 %v781, %v784
    %788 = vrot.lane.b32.xlu0 %v786, 64
    %v789 = vpop.permute.xlu0 %788
    %v791 = vadd.f32 %v702, %v789
    %v792 = vtanh.pop %v791
    %v793 = vsub.f32 1.0, %v781
    %795 = vrot.lane.b32.xlu0 %v792, 96
    %v796 = vpop.permute.xlu0 %795
    %v798 = vmul.f32 %v793, %v796
    %v799 = vmul.f32 %v781, %v694
    %v800 = vadd.f32 %v798, %v799
    %802 = vrot.lane.b32.xlu0 %v800, 96
    %v803 = vpop.permute.xlu0 %802
    %s805 = scalar_lea.vmem [#allocation8], 12
    %806 = vst.msk [vmem:[%s805] sm:$0x3] %vm169, %v803
    %s807 = scalar_lea.vmem [#allocation3], 14
    %v808 = vld [vmem:[%s807] sm:$0x3]
    %v809 = vsel %vm62, %v803, 0
    %811 = vmatprep.subr.mxu0 0.0
    %812 = vmatpush1.msra.mxu0 %v49
    %813 = vmatprep.subr.mxu0 0.0
    %814 = vmatpush1.msra.mxu0 %v50
    %815 = vmatprep.subr.mxu0 0.0
    %816 = vmatpush1.msra.mxu0 %v51
    %817 = vmatprep.subr.mxu0 0.0
    %818 = vmatpush1.msra.mxu0 %v52
    %819 = vmatprep.subr.mxu0 0.0
    %820 = vmatpush1.msra.mxu0 0.0
    %821 = vmatprep.subr.mxu0 0.0
    %822 = vmatpush1.msra.mxu0 0.0
    %823 = vmatprep.subr.mxu0 0.0
    %824 = vmatpush1.msra.mxu0 0.0
    %825 = vmatprep.subr.mxu0 0.0
    %826 = vmatpush1.msra.mxu0 0.0
    %827 = vmatprep.subr.mxu0 0.0
    %828 = vmatpush1.msra.mxu0 0.0
    %829 = vmatprep.subr.mxu0 0.0
    %830 = vmatpush1.msra.mxu0 0.0
    %831 = vmatprep.subr.mxu0 0.0
    %832 = vmatpush1.msra.mxu0 0.0
    %833 = vmatprep.subr.mxu0 0.0
    %834 = vmatpush1.msra.mxu0 0.0
    %835 = vmatprep.subr.mxu0 0.0
    %836 = vmatpush1.msra.mxu0 0.0
    %837 = vmatprep.subr.mxu0 0.0
    %838 = vmatpush1.msra.mxu0 0.0
    %839 = vmatprep.subr.mxu0 0.0
    %840 = vmatpush1.msra.mxu0 0.0
    %841 = vmatprep.subr.mxu0 0.0
    %842 = vmatpush1.msra.mxu0 0.0
    %843 = vmatprep.subr.mxu0 0.0
    %844 = vmatpush1.msra.mxu0 0.0
    %845 = vmatprep.subr.mxu0 0.0
    %846 = vmatpush1.msra.mxu0 0.0
    %847 = vmatprep.subr.mxu0 0.0
    %848 = vmatpush1.msra.mxu0 0.0
    %849 = vmatprep.subr.mxu0 0.0
    %850 = vmatpush1.msra.mxu0 0.0
    %851 = vmatprep.subr.mxu0 0.0
    %852 = vmatpush1.msra.mxu0 0.0
    %853 = vmatprep.subr.mxu0 0.0
    %854 = vmatpush1.msra.mxu0 0.0
    %855 = vmatprep.subr.mxu0 0.0
    %856 = vmatpush1.msra.mxu0 0.0
    %857 = vmatprep.subr.mxu0 0.0
    %858 = vmatpush1.msra.mxu0 0.0
    %859 = vmatprep.subr.mxu0 0.0
    %860 = vmatpush1.msra.mxu0 0.0
    %861 = vmatprep.subr.mxu0 0.0
    %862 = vmatpush1.msra.mxu0 0.0
    %863 = vmatprep.subr.mxu0 0.0
    %864 = vmatpush1.msra.mxu0 0.0
    %865 = vmatprep.subr.mxu0 0.0
    %866 = vmatpush1.msra.mxu0 0.0
    %867 = vmatprep.subr.mxu0 0.0
    %868 = vmatpush1.msra.mxu0 0.0
    %869 = vmatprep.subr.mxu0 0.0
    %870 = vmatpush1.msra.mxu0 0.0
    %871 = vmatprep.subr.mxu0 0.0
    %872 = vmatpush1.msra.mxu0 0.0
    %873 = vmatprep.subr.mxu0 0.0
    %874 = vmatpush1.msra.mxu0 0.0
    %875 = vmatprep.mubr.f32.mxu0 0.0
    %876 = vmatmul.mubr.f32.gmra.mrb[0].mxu0 %v809
    %v877 = vpop.f32.mrb[0].mxu0
    %v878 = vadd.f32 %v60, %v877
    %v879 = vpop.f32.mrb[0].mxu0
    %880 = vdwg.mxu0
    %v881 = vadd.f32 %v808, %v878
    %v882 = vxor.u32 %v881, 2147483648
    %v883 = vmul.f32 %v882, 1.442695
    %v884 = vpow.pop %v883
    %v885 = vadd.f32 %v884, 1.0
    %v886 = vrcp.pop %v885
    %v887 = vmul.f32 1.0, %v886
    %889 = vrot.lane.b32.xlu0 %v878, 64
    %v890 = vpop.permute.xlu0 %889
    %v892 = vmul.f32 %v887, %v890
    %894 = vrot.lane.b32.xlu0 %v892, 64
    %v895 = vpop.permute.xlu0 %894
    %v897 = vadd.f32 %v808, %v895
    %v898 = vtanh.pop %v897
    %v899 = vsub.f32 1.0, %v887
    %901 = vrot.lane.b32.xlu0 %v898, 96
    %v902 = vpop.permute.xlu0 %901
    %v904 = vmul.f32 %v899, %v902
    %v905 = vmul.f32 %v887, %v800
    %v906 = vadd.f32 %v904, %v905
    %908 = vrot.lane.b32.xlu0 %v906, 96
    %v909 = vpop.permute.xlu0 %908
    %s911 = scalar_lea.vmem [#allocation8], 14
    %912 = vst.msk [vmem:[%s911] sm:$0x3] %vm169, %v909
    %913 = vst.msk [vmem:[#allocation2] sm:$0x3] %vm169, %v909
    // Predicated region
    $region26: #{tpu_custom_call.1} parent=1 // pred_check
      _
    $region27: #{tpu_custom_call.1} parent=1 // pred_check_branch
      %915 = sbr.rel (0) target = $region29
    $region28: #{tpu_custom_call.1} parent=1 // pred_region
      %s917 = ssub.s32 256, 256
      %918 = vsyncadd [#allocation5], %s917
      %s919 = sshll.u32 [#allocation8], 4
      %s920 = int_to_ptr.vmem [resolvable:$true] %s919
      %925 = dma.vmem_to_hbm [thread:$0]  %s920, 256, %s3, [#allocation5], 32, 32, 2
    $region29: #{tpu_custom_call.1} parent=1 // pred_fallthru
      _
    // Predicated region
    $region30: #{tpu_custom_call.1} parent=1 // pred_check
      _
    $region31: #{tpu_custom_call.1} parent=1 // pred_check_branch
      %927 = sbr.rel (0) target = $region33
    $region32: #{tpu_custom_call.1} parent=1 // pred_region
      %928 = dma.done [#allocation5], 256
    $region33: #{tpu_custom_call.1} parent=1 // pred_fallthru
      _
    %929 = vsyncpa [#allocation4], 1
    %930 = vsyncpa [#allocation7], 1
    %931 = vsyncpa [#allocation5], 1

</llo_original>
